<compile_context>
chip_gen: v6e
topology: v6e:2x2x1
jax: 0.10.0
libtpu: 0.0.40
codegen_flags: <defaults>
</compile_context>

<pallas_src>
import functools
import math

import jax
import jax.numpy as jnp
import numpy as np
from jax.experimental import pallas as pl
from jax.experimental.pallas import tpu as pltpu

VMEM_LIMIT = 32 * 1024 * 1024  # explicit scoped-VMEM budget (safe on v5e/v6e/v7x)


# ---------------- Fused Conv(1x1,no bias)+BN(eval)+Hardswish + (p + Linear(p)) ----------------
def _conv_bn_hsw_linear_kernel(x_ref, wc_ref, scale_ref, cb_ref, wl_ref, lb_ref, o_ref):
    cd = wc_ref.dtype                                   # MXU input dtype (f32 or bf16)
    x = x_ref[...]                                      # (T, C1) f32
    y = jnp.dot(x.astype(cd), wc_ref[...], preferred_element_type=jnp.float32)
    y = y * scale_ref[...] + cb_ref[...]                # folded BatchNorm (eval mode)
    y = y * jnp.clip(y + 3.0, 0.0, 6.0) * (1.0 / 6.0)   # Hardswish (f32)
    o_ref[...] = y + jnp.dot(y.astype(cd), wl_ref[...],
                             preferred_element_type=jnp.float32) + lb_ref[...]


def conv_bn_hsw_linear(x2d, wc, scale, cbias, wl, lbias, *, row_tile=512):
    n, c1 = x2d.shape
    c2 = wc.shape[1]
    t = n if n <= row_tile else row_tile
    return pl.pallas_call(
        _conv_bn_hsw_linear_kernel,
        out_shape=jax.ShapeDtypeStruct((n, c2), jnp.float32),
        grid_spec=pltpu.PrefetchScalarGridSpec(
            num_scalar_prefetch=0,
            grid=(pl.cdiv(n, t),),
            in_specs=[
                pl.BlockSpec((t, c1), lambda i: (i, 0)),      # streamed token tile
                pl.BlockSpec((c1, c2), lambda i: (0, 0)),     # weights resident
                pl.BlockSpec((1, c2), lambda i: (0, 0)),
                pl.BlockSpec((1, c2), lambda i: (0, 0)),
                pl.BlockSpec((c2, c2), lambda i: (0, 0)),
                pl.BlockSpec((1, c2), lambda i: (0, 0)),
            ],
            out_specs=pl.BlockSpec((t, c2), lambda i: (i, 0)),
        ),
        compiler_params=pltpu.CompilerParams(
            dimension_semantics=("parallel",),
            vmem_limit_bytes=VMEM_LIMIT),
    )(x2d, wc, scale, cbias, wl, lbias)


# ---------------- p + Linear(p) only (used when conv is None) ----------------
def _add_linear_kernel(p_ref, wl_ref, lb_ref, o_ref):
    p = p_ref[...]
    o_ref[...] = p + jnp.dot(p.astype(wl_ref.dtype), wl_ref[...],
                             preferred_element_type=jnp.float32) + lb_ref[...]


def add_linear(p2d, wl, lbias, *, row_tile=512):
    n, c = p2d.shape
    t = n if n <= row_tile else row_tile
    return pl.pallas_call(
        _add_linear_kernel,
        out_shape=jax.ShapeDtypeStruct((n, c), jnp.float32),
        grid_spec=pltpu.PrefetchScalarGridSpec(
            num_scalar_prefetch=0,
            grid=(pl.cdiv(n, t),),
            in_specs=[
                pl.BlockSpec((t, c), lambda i: (i, 0)),
                pl.BlockSpec((c, c), lambda i: (0, 0)),
                pl.BlockSpec((1, c), lambda i: (0, 0)),
            ],
            out_specs=pl.BlockSpec((t, c), lambda i: (i, 0)),
        ),
        compiler_params=pltpu.CompilerParams(
            dimension_semantics=("parallel",),
            vmem_limit_bytes=VMEM_LIMIT),
    )(p2d, wl, lbias)


# ---------------- All TransformerLayers fused into one call (grid over layers) ----------------
def _tr_layers_kernel(z0_ref, wqkv_ref, bqkv_ref, wo_ref, bo_ref, wmlp_ref, z_ref,
                      *, seq, batch, num_heads):
    S, B, H = seq, batch, num_heads
    N, C = z_ref.shape                  # N = B*S, rows are batch-major (row = b*S + s)
    D = C // H
    cd = wqkv_ref.dtype                 # MXU input dtype; accumulation stays f32

    @pl.when(pl.program_id(0) == 0)     # layer 0: load the resident activation block
    def _():
        z_ref[...] = z0_ref[...]

    z = z_ref[...]                      # (N, C) f32

    # Fused (pre-folded) q/k/v projection: one lane-dense GEMM, scaling already folded in.
    qkv = jnp.dot(z.astype(cd), wqkv_ref[0],
                  preferred_element_type=jnp.float32) + bqkv_ref[0]       # (N, 3C) f32

    def split_heads(a):                 # (N, C) -> (H*B, S, D), head-major merged batch
        a3 = jnp.transpose(a.reshape(N, H, D), (1, 0, 2))                 # (H, N, D)
        return a3.reshape(H * B, S, D)

    q = split_heads(qkv[:, 0 * C:1 * C]).astype(cd)
    k = split_heads(qkv[:, 1 * C:2 * C]).astype(cd)
    v = split_heads(qkv[:, 2 * C:3 * C]).astype(cd)

    # Batched scaled-dot-product attention over the merged (head, batch) axis.
    s = jnp.einsum("nsd,ntd->nst", q, k, preferred_element_type=jnp.float32)
    s = s - jnp.max(s, axis=-1, keepdims=True)
    e = jnp.exp(s)
    p = e * pl.reciprocal(jnp.sum(e, axis=-1, keepdims=True), approx=True)
    ctx = jnp.einsum("nst,ntd->nsd", p.astype(cd), v,
                     preferred_element_type=jnp.float32)                   # (H*B, S, D)

    # Merge heads back to (N, C) (inverse of split_heads).
    ctx2 = jnp.transpose(ctx.reshape(H, N, D), (1, 0, 2)).reshape(N, C)

    x1 = jnp.dot(ctx2.astype(cd), wo_ref[0],
                 preferred_element_type=jnp.float32) + bo_ref[0] + z       # out_proj + residual
    z_ref[...] = jnp.dot(x1.astype(cd), wmlp_ref[0],
                         preferred_element_type=jnp.float32) + x1          # folded fc2@fc1 + residual


def transformer_layers(z0, wqkv, bqkv, wo, bo, wmlp, *, seq, batch, num_heads):
    num_layers = wqkv.shape[0]
    if num_layers == 0:
        return z0
    n, c = z0.shape
    kern = functools.partial(_tr_layers_kernel, seq=seq, batch=batch, num_heads=num_heads)
    return pl.pallas_call(
        kern,
        out_shape=jax.ShapeDtypeStruct((n, c), jnp.float32),
        grid_spec=pltpu.PrefetchScalarGridSpec(
            num_scalar_prefetch=0,
            grid=(num_layers,),
            in_specs=[
                pl.BlockSpec((n, c), lambda l: (0, 0)),            # activation, VMEM-resident
                pl.BlockSpec((1, c, 3 * c), lambda l: (l, 0, 0)),  # per-layer weights stream
                pl.BlockSpec((1, 1, 3 * c), lambda l: (l, 0, 0)),
                pl.BlockSpec((1, c, c), lambda l: (l, 0, 0)),
                pl.BlockSpec((1, 1, c), lambda l: (l, 0, 0)),
                pl.BlockSpec((1, c, c), lambda l: (l, 0, 0)),
            ],
            out_specs=pl.BlockSpec((n, c), lambda l: (0, 0)),      # resident accumulator
        ),
        compiler_params=pltpu.CompilerParams(
            dimension_semantics=("arbitrary",),
            vmem_limit_bytes=VMEM_LIMIT),
    )(z0, wqkv, bqkv, wo, bo, wmlp)


# ---------------- Full TransformerBlock forward (glue in plain JAX) ----------------
def transformer_block_forward(x_nchw, prepared, c2, num_heads):
    b, c1, hh, ww = x_nchw.shape
    S = hh * ww
    x2 = jnp.transpose(x_nchw, (0, 2, 3, 1)).reshape(b * S, c1)   # batch-major token rows
    wl, lb = prepared["linear"]
    if prepared["conv"] is not None:
        wc, scale, cbias = prepared["conv"]
        z0 = conv_bn_hsw_linear(x2, wc, scale, cbias, wl, lb)
    else:
        z0 = add_linear(x2, wl, lb)
    z = transformer_layers(z0, *prepared["layers"], seq=S, batch=b, num_heads=num_heads)
    # (b*S, c2) batch-major -> NCHW (matches the PyTorch .reshape(b, c2, w, h))
    return jnp.transpose(z.reshape(b, S, c2), (0, 2, 1)).reshape(b, c2, hh, ww)


# ---------------- Host-side weight folding / pre-transposition ----------------
def prepare_params(params, num_heads, compute_dtype=jnp.float32):
    hi = jax.lax.Precision.HIGHEST
    prepared = {}
    if params["conv"] is not None:
        w, scale, bias = params["conv"]
        prepared["conv"] = (w.T.astype(compute_dtype), scale, bias)
    else:
        prepared["conv"] = None
    lw, lb = params["linear"]
    prepared["linear"] = (lw.T.astype(compute_dtype), lb)

    c = lw.shape[0]
    d = c // num_heads
    scal = 1.0 / math.sqrt(d)
    wqkv, bqkv, wo_l, bo_l, wmlp = [], [], [], [], []
    for (wq, wk, wv, wqi, wki, wvi, bqi, bki, bvi, wo, bo, w1, w2) in params["layers"]:
        wq_eff = jnp.matmul(wqi, wq, precision=hi).T * scal    # (C, C), right-multiply form
        wk_eff = jnp.matmul(wki, wk, precision=hi).T
        wv_eff = jnp.matmul(wvi, wv, precision=hi).T
        wqkv.append(jnp.concatenate([wq_eff, wk_eff, wv_eff], axis=1))   # (C, 3C)
        bqkv.append(jnp.concatenate([bqi * scal, bki, bvi], axis=1))     # (1, 3C)
        wo_l.append(wo.T)
        bo_l.append(bo)
        wmlp.append(jnp.matmul(w2, w1, precision=hi).T)                   # fc2@fc1 fold (no act between)
    prepared["layers"] = (
        jnp.stack(wqkv).astype(compute_dtype),   # (L, C, 3C)
        jnp.stack(bqkv),                         # (L, 1, 3C)  f32
        jnp.stack(wo_l).astype(compute_dtype),   # (L, C, C)
        jnp.stack(bo_l),                         # (L, 1, C)   f32
        jnp.stack(wmlp).astype(compute_dtype),   # (L, C, C)
    )
    return prepared


# ---------------- Deterministic parameter init ----------------
def init_params(key, c1, c2, num_heads, num_layers):
    keys = jax.random.split(key, 8 + 16 * num_layers)
    ki = iter(keys)

    def nrm(shape, scale):
        return jax.random.normal(next(ki), shape, jnp.float32) * scale

    params = {}
    if c1 != c2:
        conv_w = nrm((c2, c1), 1.0 / math.sqrt(c1))
        gamma = 1.0 + 0.1 * jax.random.normal(next(ki), (c2,), jnp.float32)
        beta = 0.1 * jax.random.normal(next(ki), (c2,), jnp.float32)
        running_mean = jnp.zeros((c2,), jnp.float32)
        running_var = jnp.ones((c2,), jnp.float32)
        inv_std = 1.0 / jnp.sqrt(running_var + 1e-5)
        scale = (gamma * inv_std).reshape(1, c2)
        bias = (beta - running_mean * gamma * inv_std).reshape(1, c2)
        params["conv"] = (conv_w, scale, bias)
    else:
        params["conv"] = None

    s = 1.0 / math.sqrt(c2)
    params["linear"] = (nrm((c2, c2), s), nrm((1, c2), 0.05))

    layers = []
    for _ in range(num_layers):
        layers.append((
            nrm((c2, c2), s),    # wq
            nrm((c2, c2), s),    # wk
            nrm((c2, c2), s),    # wv
            nrm((c2, c2), s),    # in_proj W_q
            nrm((c2, c2), s),    # in_proj W_k
            nrm((c2, c2), s),    # in_proj W_v
            nrm((1, c2), 0.05),  # in_proj b_q
            nrm((1, c2), 0.05),  # in_proj b_k
            nrm((1, c2), 0.05),  # in_proj b_v
            nrm((c2, c2), s),    # out_proj W
            nrm((1, c2), 0.05),  # out_proj b
            nrm((c2, c2), s),    # fc1
            nrm((c2, c2), s),    # fc2
        ))
    params["layers"] = layers
    return params


# ---------------- Pure-JAX reference (unfolded, matches PyTorch semantics) ----------------
def ref_forward(x_nchw, params, c2, num_heads):
    b, c1, H, W = x_nchw.shape
    if params["conv"] is not None:
        w, scale, bias = params["conv"]
        xt = jnp.transpose(x_nchw, (0, 2, 3, 1)).reshape(b * H * W, c1)
        y = (xt @ w.T) * scale + bias
        y = y * jnp.clip(y + 3.0, 0.0, 6.0) / 6.0
        x_nhwc = y.reshape(b, H, W, c2)
    else:
        x_nhwc = jnp.transpose(x_nchw, (0, 2, 3, 1))
    S = H * W
    p = x_nhwc.reshape(b, S, c2).transpose(1, 0, 2)
    lw, lb = params["linear"]
    z = p + p @ lw.T + lb
    D = c2 // num_heads
    for (wq, wk, wv, wqi, wki, wvi, bqi, bki, bvi, wo, bo, w1, w2) in params["layers"]:
        q = ((z @ wq.T) @ wqi.T + bqi) / math.sqrt(D)
        k = (z @ wk.T) @ wki.T + bki
        v = (z @ wv.T) @ wvi.T + bvi
        q = q.reshape(S, b, num_heads, D)
        k = k.reshape(S, b, num_heads, D)
        v = v.reshape(S, b, num_heads, D)
        s = jnp.einsum('sbhd,tbhd->bhst', q, k)
        a = jax.nn.softmax(s, axis=-1)
        ctx = jnp.einsum('bhst,tbhd->sbhd', a, v).reshape(S, b, c2)
        z = ctx @ wo.T + bo + z
        z = (z @ w1.T) @ w2.T + z
    return z.transpose(1, 2, 0).reshape(b, c2, H, W)


if __name__ == "__main__":
    # Config 1: c1 != c2 -> Conv branch exercised.
    B, C1, C2, H, W = 2, 4, 32, 8, 8
    NUM_HEADS, NUM_LAYERS = 4, 2

    key = jax.random.PRNGKey(0)
    kx, kp, kx2, kp2 = jax.random.split(key, 4)
    x = jax.random.normal(kx, (B, C1, H, W), jnp.float32)
    params = init_params(kp, C1, C2, NUM_HEADS, NUM_LAYERS)
    ref = jax.block_until_ready(ref_forward(x, params, C2, NUM_HEADS))

    # f32 MXU inputs (reference-precision path).
    prep32 = prepare_params(params, NUM_HEADS, jnp.float32)
    out32 = jax.block_until_ready(transformer_block_forward(x, prep32, C2, NUM_HEADS))
    assert out32.shape == (B, C2, H, W)
    np.testing.assert_allclose(np.asarray(out32), np.asarray(ref), atol=1e-2, rtol=1e-2)

    # bf16 MXU inputs (v6e/v7x fast path), f32 accumulation / softmax stats / residuals.
    prep16 = prepare_params(params, NUM_HEADS, jnp.bfloat16)
    out16 = jax.block_until_ready(transformer_block_forward(x, prep16, C2, NUM_HEADS))
    err = float(np.max(np.abs(np.asarray(out16) - np.asarray(ref))))
    assert err <= 5e-2 * float(np.max(np.abs(np.asarray(ref)))), f"bf16 path error too large: {err}"

    # Config 2: c1 == c2 -> conv is None, add_linear kernel exercised.
    B2, Cc, H2, W2 = 1, 32, 4, 4
    x_b = jax.random.normal(kx2, (B2, Cc, H2, W2), jnp.float32)
    params_b = init_params(kp2, Cc, Cc, 2, 1)
    ref_b = jax.block_until_ready(ref_forward(x_b, params_b, Cc, 2))
    prep_b = prepare_params(params_b, 2, jnp.float32)
    out_b = jax.block_until_ready(transformer_block_forward(x_b, prep_b, Cc, 2))
    np.testing.assert_allclose(np.asarray(out_b), np.asarray(ref_b), atol=1e-2, rtol=1e-2)

    print("KERNEL_OK")
</pallas_src>

<mosaic_0001>
module attributes {stable_mosaic.version = 11 : i64} {
  func.func @_conv_bn_hsw_linear_kernel(%arg0: i32, %arg1: memref<128x4xf32, #tpu.memory_space<vmem>>, %arg2: memref<4x32xf32, #tpu.memory_space<vmem>>, %arg3: memref<1x32xf32, #tpu.memory_space<vmem>>, %arg4: memref<1x32xf32, #tpu.memory_space<vmem>>, %arg5: memref<32x32xf32, #tpu.memory_space<vmem>>, %arg6: memref<1x32xf32, #tpu.memory_space<vmem>>, %arg7: memref<128x32xf32, #tpu.memory_space<vmem>>) attributes {dimension_semantics = [#tpu.dimension_semantics<parallel>], iteration_bounds = array<i64: 1>, scalar_prefetch = 0 : i64, scratch_operands = 0 : i64, tpu.core_type = #tpu.core_type<tc>, window_params = [{transform_indices = @transform_0, window_bounds = array<i64: 128, 4>}, {pipeline_mode = #tpu.pipeline_mode<synchronous>, transform_indices = @transform_1, window_bounds = array<i64: 4, 32>}, {pipeline_mode = #tpu.pipeline_mode<synchronous>, transform_indices = @transform_2, window_bounds = array<i64: 1, 32>}, {pipeline_mode = #tpu.pipeline_mode<synchronous>, transform_indices = @transform_3, window_bounds = array<i64: 1, 32>}, {pipeline_mode = #tpu.pipeline_mode<synchronous>, transform_indices = @transform_4, window_bounds = array<i64: 32, 32>}, {pipeline_mode = #tpu.pipeline_mode<synchronous>, transform_indices = @transform_5, window_bounds = array<i64: 1, 32>}, {transform_indices = @transform_6, window_bounds = array<i64: 128, 32>}]} {
    %c0 = arith.constant 0 : index
    %c0_0 = arith.constant 0 : index
    %0 = vector.load %arg1[%c0, %c0_0] : memref<128x4xf32, #tpu.memory_space<vmem>>, vector<128x4xf32>
    %c0_1 = arith.constant 0 : index
    %c0_2 = arith.constant 0 : index
    %1 = vector.load %arg2[%c0_1, %c0_2] : memref<4x32xf32, #tpu.memory_space<vmem>>, vector<4x32xf32>
    %cst = arith.constant dense<0.000000e+00> : vector<128x32xf32>
    %2 = tpu.matmul %0, %1, %cst {dimension_numbers = #tpu.dot_dimension_numbers<[1], [0], [0], [1], [0, 0, 1, 1], [], []>} : vector<128x4xf32>, vector<4x32xf32>, vector<128x32xf32> -> vector<128x32xf32>
    %c0_3 = arith.constant 0 : index
    %c0_4 = arith.constant 0 : index
    %3 = vector.load %arg3[%c0_3, %c0_4] : memref<1x32xf32, #tpu.memory_space<vmem>>, vector<1x32xf32>
    %4 = vector.broadcast %3 : vector<1x32xf32> to vector<128x32xf32>
    %5 = arith.mulf %2, %4 : vector<128x32xf32>
    %c0_5 = arith.constant 0 : index
    %c0_6 = arith.constant 0 : index
    %6 = vector.load %arg4[%c0_5, %c0_6] : memref<1x32xf32, #tpu.memory_space<vmem>>, vector<1x32xf32>
    %7 = vector.broadcast %6 : vector<1x32xf32> to vector<128x32xf32>
    %8 = arith.addf %5, %7 : vector<128x32xf32>
    %cst_7 = arith.constant 3.000000e+00 : f32
    %9 = vector.broadcast %cst_7 : f32 to vector<128x32xf32>
    %10 = arith.addf %8, %9 : vector<128x32xf32>
    %cst_8 = arith.constant 0.000000e+00 : f32
    %cst_9 = arith.constant 6.000000e+00 : f32
    %11 = vector.broadcast %cst_8 : f32 to vector<128x32xf32>
    %12 = arith.maximumf %11, %10 : vector<128x32xf32>
    %13 = vector.broadcast %cst_9 : f32 to vector<128x32xf32>
    %14 = arith.minimumf %13, %12 : vector<128x32xf32>
    %15 = arith.mulf %8, %14 : vector<128x32xf32>
    %cst_10 = arith.constant 0.166666672 : f32
    %16 = vector.broadcast %cst_10 : f32 to vector<128x32xf32>
    %17 = arith.mulf %15, %16 : vector<128x32xf32>
    %c0_11 = arith.constant 0 : index
    %c0_12 = arith.constant 0 : index
    %18 = vector.load %arg5[%c0_11, %c0_12] : memref<32x32xf32, #tpu.memory_space<vmem>>, vector<32x32xf32>
    %cst_13 = arith.constant dense<0.000000e+00> : vector<128x32xf32>
    %19 = tpu.matmul %17, %18, %cst_13 {dimension_numbers = #tpu.dot_dimension_numbers<[1], [0], [0], [1], [0, 0, 1, 1], [], []>} : vector<128x32xf32>, vector<32x32xf32>, vector<128x32xf32> -> vector<128x32xf32>
    %20 = arith.addf %17, %19 : vector<128x32xf32>
    %c0_14 = arith.constant 0 : index
    %c0_15 = arith.constant 0 : index
    %21 = vector.load %arg6[%c0_14, %c0_15] : memref<1x32xf32, #tpu.memory_space<vmem>>, vector<1x32xf32>
    %22 = vector.broadcast %21 : vector<1x32xf32> to vector<128x32xf32>
    %23 = arith.addf %20, %22 : vector<128x32xf32>
    %c0_16 = arith.constant 0 : index
    %c0_17 = arith.constant 0 : index
    %24 = vector.load %arg7[%c0_16, %c0_17] : memref<128x32xf32, #tpu.memory_space<vmem>>, vector<128x32xf32>
    tpu.vector_store %arg7[%c0_16, %c0_17], %23 {strides = array<i32>} : memref<128x32xf32, #tpu.memory_space<vmem>>, vector<128x32xf32>,
    return
  }
  func.func @transform_0(%arg0: i32) -> (i32, i32) {
    %c0_i32 = arith.constant 0 : i32
    %c0_i32_0 = arith.constant 0 : i32
    return %arg0, %c0_i32 : i32, i32
  }
  func.func @transform_1(%arg0: i32) -> (i32, i32) {
    %c0_i32 = arith.constant 0 : i32
    %c0_i32_0 = arith.constant 0 : i32
    %c0_i32_1 = arith.constant 0 : i32
    return %c0_i32, %c0_i32_0 : i32, i32
  }
  func.func @transform_2(%arg0: i32) -> (i32, i32) {
    %c0_i32 = arith.constant 0 : i32
    %c0_i32_0 = arith.constant 0 : i32
    %c0_i32_1 = arith.constant 0 : i32
    return %c0_i32, %c0_i32_0 : i32, i32
  }
  func.func @transform_3(%arg0: i32) -> (i32, i32) {
    %c0_i32 = arith.constant 0 : i32
    %c0_i32_0 = arith.constant 0 : i32
    %c0_i32_1 = arith.constant 0 : i32
    return %c0_i32, %c0_i32_0 : i32, i32
  }
  func.func @transform_4(%arg0: i32) -> (i32, i32) {
    %c0_i32 = arith.constant 0 : i32
    %c0_i32_0 = arith.constant 0 : i32
    %c0_i32_1 = arith.constant 0 : i32
    return %c0_i32, %c0_i32_0 : i32, i32
  }
  func.func @transform_5(%arg0: i32) -> (i32, i32) {
    %c0_i32 = arith.constant 0 : i32
    %c0_i32_0 = arith.constant 0 : i32
    %c0_i32_1 = arith.constant 0 : i32
    return %c0_i32, %c0_i32_0 : i32, i32
  }
  func.func @transform_6(%arg0: i32) -> (i32, i32) {
    %c0_i32 = arith.constant 0 : i32
    %c0_i32_0 = arith.constant 0 : i32
    return %arg0, %c0_i32 : i32, i32
  }
}

</mosaic_0001>

<llo_original>
// kernel: tpu_custom_call.1
$region0: #{tpu_custom_call.1}
  #allocation0 [shape = 'u32[]', space=smem, size = 0x4, offset = 0x4, fixed_abs, tag = 'smem constant byte address 0x4 - core index']
  #allocation1 [shape = 'u32[144,128]{1,0:T(1,128)}', space=vmem, size = 0x12000, scoped, tag = 'internal scratch']
  %s0 = inlined_call_operand.vmem [shape: f32[128,4], index: 0, kind: input, shape index: {}]
  %s1 = inlined_call_operand.vmem [shape: f32[4,32], index: 1, kind: input, shape index: {}]
  %s2 = inlined_call_operand.vmem [shape: f32[1,32], index: 2, kind: input, shape index: {}]
  %s3 = inlined_call_operand.vmem [shape: f32[1,32], index: 3, kind: input, shape index: {}]
  %s4 = inlined_call_operand.vmem [shape: f32[32,32], index: 4, kind: input, shape index: {}]
  %s5 = inlined_call_operand.vmem [shape: f32[1,32], index: 5, kind: input, shape index: {}]
  %s6 = inlined_call_operand.vmem [shape: f32[128,32], index: 6, kind: output, shape index: {}]
  %s7 = sld [smem:[#allocation0]]
  $region34: #{tpu_custom_call.1} parent=0
    _
  %s9 = ssub.s32 1, %s7
  %s10 = scalar_select 0, %s9, %s7
  // Predicated region
  $region2: #{tpu_custom_call.1} parent=0 // pred_check
    _
  $region3: #{tpu_custom_call.1} parent=0 // pred_check_branch
    %12 = sbr.rel (0) target = $region5
  $region4: #{tpu_custom_call.1} parent=0 // pred_region
    _
  $region5: #{tpu_custom_call.1} parent=0 // pred_fallthru
    _
  // Predicated region
  $region6: #{tpu_custom_call.1} parent=0 // pred_check
    _
  $region7: #{tpu_custom_call.1} parent=0 // pred_check_branch
    %14 = sbr.rel (0) target = $region9
  $region8: #{tpu_custom_call.1} parent=0 // pred_region
    _
  $region9: #{tpu_custom_call.1} parent=0 // pred_fallthru
    _
  // Predicated region
  $region10: #{tpu_custom_call.1} parent=0 // pred_check
    _
  $region11: #{tpu_custom_call.1} parent=0 // pred_check_branch
    %16 = sbr.rel (0) target = $region13
  $region12: #{tpu_custom_call.1} parent=0 // pred_region
    _
  $region13: #{tpu_custom_call.1} parent=0 // pred_fallthru
    _
  // Predicated region
  $region14: #{tpu_custom_call.1} parent=0 // pred_check
    _
  $region15: #{tpu_custom_call.1} parent=0 // pred_check_branch
    %18 = sbr.rel (0) target = $region17
  $region16: #{tpu_custom_call.1} parent=0 // pred_region
    _
  $region17: #{tpu_custom_call.1} parent=0 // pred_fallthru
    _
  // Predicated region
  $region18: #{tpu_custom_call.1} parent=0 // pred_check
    _
  $region19: #{tpu_custom_call.1} parent=0 // pred_check_branch
    %20 = sbr.rel (0) target = $region21
  $region20: #{tpu_custom_call.1} parent=0 // pred_region
    _
  $region21: #{tpu_custom_call.1} parent=0 // pred_fallthru
    _
  // Predicated region
  $region22: #{tpu_custom_call.1} parent=0 // pred_check
    _
  $region23: #{tpu_custom_call.1} parent=0 // pred_check_branch
    %22 = sbr.rel (0) target = $region25
  $region24: #{tpu_custom_call.1} parent=0 // pred_region
    _
  $region25: #{tpu_custom_call.1} parent=0 // pred_fallthru
    _
  %v23 = vld [vmem:[%s0] sm:$0xff]
  %v24 = vld [vmem:[%s0 + $0x8] sm:$0xff]
  %v25 = vld [vmem:[%s0 + $0x10] sm:$0xff]
  %v26 = vld [vmem:[%s0 + $0x18] sm:$0xff]
  %v27 = vld [vmem:[%s0 + $0x20] sm:$0xff]
  %v28 = vld [vmem:[%s0 + $0x28] sm:$0xff]
  %v29 = vld [vmem:[%s0 + $0x30] sm:$0xff]
  %v30 = vld [vmem:[%s0 + $0x38] sm:$0xff]
  %v31 = vld [vmem:[%s0 + $0x40] sm:$0xff]
  %v32 = vld [vmem:[%s0 + $0x48] sm:$0xff]
  %v33 = vld [vmem:[%s0 + $0x50] sm:$0xff]
  %v34 = vld [vmem:[%s0 + $0x58] sm:$0xff]
  %v35 = vld [vmem:[%s0 + $0x60] sm:$0xff]
  %v36 = vld [vmem:[%s0 + $0x68] sm:$0xff]
  %v37 = vld [vmem:[%s0 + $0x70] sm:$0xff]
  %v38 = vld [vmem:[%s0 + $0x78] sm:$0xff]
  %v39 = vld [vmem:[%s1] sm:$0xf]
  %vm40 = vcmask 31744
  %v42 = vsel %vm40, %v23, 0
  %v45 = vsel %vm40, %v24, 0
  %v48 = vsel %vm40, %v25, 0
  %v51 = vsel %vm40, %v26, 0
  %v54 = vsel %vm40, %v27, 0
  %v57 = vsel %vm40, %v28, 0
  %v60 = vsel %vm40, %v29, 0
  %v63 = vsel %vm40, %v30, 0
  %v66 = vsel %vm40, %v31, 0
  %v69 = vsel %vm40, %v32, 0
  %v72 = vsel %vm40, %v33, 0
  %v75 = vsel %vm40, %v34, 0
  %v78 = vsel %vm40, %v35, 0
  %v81 = vsel %vm40, %v36, 0
  %v84 = vsel %vm40, %v37, 0
  %v87 = vsel %vm40, %v38, 0
  %vm89 = vcmask 1043456
  %v91 = vsel %vm89, %v39, 0
  %93 = vmatprep.subr.mxu0 0.0
  %94 = vmatpush1.msra.mxu0 0.0
  %95 = vmatprep.subr.mxu0 0.0
  %96 = vmatpush1.msra.mxu0 0.0
  %97 = vmatprep.subr.mxu0 0.0
  %98 = vmatpush1.msra.mxu0 0.0
  %99 = vmatprep.subr.mxu0 0.0
  %100 = vmatpush1.msra.mxu0 0.0
  %101 = vmatprep.subr.mxu0 0.0
  %102 = vmatpush1.msra.mxu0 0.0
  %103 = vmatprep.subr.mxu0 0.0
  %104 = vmatpush1.msra.mxu0 0.0
  %105 = vmatprep.subr.mxu0 0.0
  %106 = vmatpush1.msra.mxu0 0.0
  %107 = vmatprep.subr.mxu0 0.0
  %108 = vmatpush1.msra.mxu0 0.0
  %109 = vmatprep.subr.mxu0 0.0
  %110 = vmatpush1.msra.mxu0 0.0
  %111 = vmatprep.subr.mxu0 0.0
  %112 = vmatpush1.msra.mxu0 0.0
  %113 = vmatprep.subr.mxu0 0.0
  %114 = vmatpush1.msra.mxu0 0.0
  %115 = vmatprep.subr.mxu0 0.0
  %116 = vmatpush1.msra.mxu0 0.0
  %117 = vmatprep.subr.mxu0 0.0
  %118 = vmatpush1.msra.mxu0 0.0
  %119 = vmatprep.subr.mxu0 0.0
  %120 = vmatpush1.msra.mxu0 0.0
  %121 = vmatprep.subr.mxu0 0.0
  %122 = vmatpush1.msra.mxu0 0.0
  %123 = vmatprep.subr.mxu0 0.0
  %124 = vmatpush1.msra.mxu0 %v91
  %125 = vmatprep.subr.mxu0 0.0
  %126 = vmatpush2.msra.mxu0 0.0
  %127 = vmatprep.subr.mxu0 0.0
  %128 = vmatpush2.msra.mxu0 0.0
  %129 = vmatprep.subr.mxu0 0.0
  %130 = vmatpush2.msra.mxu0 0.0
  %131 = vmatprep.subr.mxu0 0.0
  %132 = vmatpush2.msra.mxu0 0.0
  %133 = vmatprep.subr.mxu0 0.0
  %134 = vmatpush2.msra.mxu0 0.0
  %135 = vmatprep.subr.mxu0 0.0
  %136 = vmatpush2.msra.mxu0 0.0
  %137 = vmatprep.subr.mxu0 0.0
  %138 = vmatpush2.msra.mxu0 0.0
  %139 = vmatprep.subr.mxu0 0.0
  %140 = vmatpush2.msra.mxu0 0.0
  %141 = vmatprep.subr.mxu0 0.0
  %142 = vmatpush2.msra.mxu0 0.0
  %143 = vmatprep.subr.mxu0 0.0
  %144 = vmatpush2.msra.mxu0 0.0
  %145 = vmatprep.subr.mxu0 0.0
  %146 = vmatpush2.msra.mxu0 0.0
  %147 = vmatprep.subr.mxu0 0.0
  %148 = vmatpush2.msra.mxu0 0.0
  %149 = vmatprep.subr.mxu0 0.0
  %150 = vmatpush2.msra.mxu0 0.0
  %151 = vmatprep.subr.mxu0 0.0
  %152 = vmatpush2.msra.mxu0 0.0
  %153 = vmatprep.subr.mxu0 0.0
  %154 = vmatpush2.msra.mxu0 0.0
  %155 = vmatprep.subr.mxu0 0.0
  %156 = vmatpush2.msra.mxu0 0.0
  %157 = vmatprep.mubr.f32.mxu0 0.0
  %158 = vmatmul.mubr.f32.gmra.mxu0 %v42
  %v159 = vpop.f32.mrf.mxu0
  %v160 = vadd.f32 0.0, %v159
  %v161 = vpop.f32.mrf.mxu0
  %162 = vmatprep.mubr.f32.mxu0 0.0
  %163 = vmatmul.mubr.f32.gmra.mxu0 %v45
  %v164 = vpop.f32.mrf.mxu0
  %v165 = vadd.f32 0.0, %v164
  %v166 = vpop.f32.mrf.mxu0
  %167 = vmatprep.mubr.f32.mxu0 0.0
  %168 = vmatmul.mubr.f32.gmra.mxu0 %v48
  %v169 = vpop.f32.mrf.mxu0
  %v170 = vadd.f32 0.0, %v169
  %v171 = vpop.f32.mrf.mxu0
  %172 = vmatprep.mubr.f32.mxu0 0.0
  %173 = vmatmul.mubr.f32.gmra.mxu0 %v51
  %v174 = vpop.f32.mrf.mxu0
  %v175 = vadd.f32 0.0, %v174
  %v176 = vpop.f32.mrf.mxu0
  %177 = vmatprep.mubr.f32.mxu0 0.0
  %178 = vmatmul.mubr.f32.gmra.mxu0 %v54
  %v179 = vpop.f32.mrf.mxu0
  %v180 = vadd.f32 0.0, %v179
  %v181 = vpop.f32.mrf.mxu0
  %182 = vmatprep.mubr.f32.mxu0 0.0
  %183 = vmatmul.mubr.f32.gmra.mxu0 %v57
  %v184 = vpop.f32.mrf.mxu0
  %v185 = vadd.f32 0.0, %v184
  %v186 = vpop.f32.mrf.mxu0
  %187 = vmatprep.mubr.f32.mxu0 0.0
  %188 = vmatmul.mubr.f32.gmra.mxu0 %v60
  %v189 = vpop.f32.mrf.mxu0
  %v190 = vadd.f32 0.0, %v189
  %v191 = vpop.f32.mrf.mxu0
  %192 = vmatprep.mubr.f32.mxu0 0.0
  %193 = vmatmul.mubr.f32.gmra.mxu0 %v63
  %v194 = vpop.f32.mrf.mxu0
  %v195 = vadd.f32 0.0, %v194
  %v196 = vpop.f32.mrf.mxu0
  %197 = vmatprep.mubr.f32.mxu0 0.0
  %198 = vmatmul.mubr.f32.gmra.mxu0 %v66
  %v199 = vpop.f32.mrf.mxu0
  %v200 = vadd.f32 0.0, %v199
  %v201 = vpop.f32.mrf.mxu0
  %202 = vmatprep.mubr.f32.mxu0 0.0
  %203 = vmatmul.mubr.f32.gmra.mxu0 %v69
  %v204 = vpop.f32.mrf.mxu0
  %v205 = vadd.f32 0.0, %v204
  %v206 = vpop.f32.mrf.mxu0
  %207 = vmatprep.mubr.f32.mxu0 0.0
  %208 = vmatmul.mubr.f32.gmra.mxu0 %v72
  %v209 = vpop.f32.mrf.mxu0
  %v210 = vadd.f32 0.0, %v209
  %v211 = vpop.f32.mrf.mxu0
  %212 = vmatprep.mubr.f32.mxu0 0.0
  %213 = vmatmul.mubr.f32.gmra.mxu0 %v75
  %v214 = vpop.f32.mrf.mxu0
  %v215 = vadd.f32 0.0, %v214
  %v216 = vpop.f32.mrf.mxu0
  %217 = vmatprep.mubr.f32.mxu0 0.0
  %218 = vmatmul.mubr.f32.gmra.mxu0 %v78
  %v219 = vpop.f32.mrf.mxu0
  %v220 = vadd.f32 0.0, %v219
  %v221 = vpop.f32.mrf.mxu0
  %222 = vmatprep.mubr.f32.mxu0 0.0
  %223 = vmatmul.mubr.f32.gmra.mxu0 %v81
  %v224 = vpop.f32.mrf.mxu0
  %v225 = vadd.f32 0.0, %v224
  %v226 = vpop.f32.mrf.mxu0
  %227 = vmatprep.mubr.f32.mxu0 0.0
  %228 = vmatmul.mubr.f32.gmra.mxu0 %v84
  %v229 = vpop.f32.mrf.mxu0
  %v230 = vadd.f32 0.0, %v229
  %v231 = vpop.f32.mrf.mxu0
  %232 = vmatprep.mubr.f32.mxu0 0.0
  %233 = vmatmul.mubr.f32.gmra.mxu0 %v87
  %v234 = vpop.f32.mrf.mxu0
  %v235 = vadd.f32 0.0, %v234
  %v236 = vpop.f32.mrf.mxu0
  %237 = vdwg.mxu0
  %v238 = vld [vmem:[%s2] sm:$0x1]
  %v240 = vlaneseq
  %v241 = vshrl.u32 %v240, 7
  %v242 = vsub.s32 0, %v241
  %v243 = vrot.slane %v238, %v242
  %v245 = vmul.f32 %v160, %v243
  %v246 = vmul.f32 %v165, %v243
  %v247 = vmul.f32 %v170, %v243
  %v248 = vmul.f32 %v175, %v243
  %v249 = vmul.f32 %v180, %v243
  %v250 = vmul.f32 %v185, %v243
  %v251 = vmul.f32 %v190, %v243
  %v252 = vmul.f32 %v195, %v243
  %v253 = vmul.f32 %v200, %v243
  %v254 = vmul.f32 %v205, %v243
  %v255 = vmul.f32 %v210, %v243
  %v256 = vmul.f32 %v215, %v243
  %v257 = vmul.f32 %v220, %v243
  %v258 = vmul.f32 %v225, %v243
  %v259 = vmul.f32 %v230, %v243
  %v260 = vmul.f32 %v235, %v243
  %v261 = vld [vmem:[%s3] sm:$0x1]
  %v263 = vlaneseq
  %v264 = vshrl.u32 %v263, 7
  %v265 = vsub.s32 0, %v264
  %v266 = vrot.slane %v261, %v265
  %v268 = vadd.f32 %v245, %v266
  %v269 = vadd.f32 %v246, %v266
  %v270 = vadd.f32 %v247, %v266
  %v271 = vadd.f32 %v248, %v266
  %v272 = vadd.f32 %v249, %v266
  %v273 = vadd.f32 %v250, %v266
  %v274 = vadd.f32 %v251, %v266
  %v275 = vadd.f32 %v252, %v266
  %v276 = vadd.f32 %v253, %v266
  %v277 = vadd.f32 %v254, %v266
  %v278 = vadd.f32 %v255, %v266
  %v279 = vadd.f32 %v256, %v266
  %v280 = vadd.f32 %v257, %v266
  %v281 = vadd.f32 %v258, %v266
  %v282 = vadd.f32 %v259, %v266
  %v283 = vadd.f32 %v260, %v266
  %v284 = vadd.f32 %v268, 3.0
  %v285 = vadd.f32 %v269, 3.0
  %v286 = vadd.f32 %v270, 3.0
  %v287 = vadd.f32 %v271, 3.0
  %v288 = vadd.f32 %v272, 3.0
  %v289 = vadd.f32 %v273, 3.0
  %v290 = vadd.f32 %v274, 3.0
  %v291 = vadd.f32 %v275, 3.0
  %v292 = vadd.f32 %v276, 3.0
  %v293 = vadd.f32 %v277, 3.0
  %v294 = vadd.f32 %v278, 3.0
  %v295 = vadd.f32 %v279, 3.0
  %v296 = vadd.f32 %v280, 3.0
  %v297 = vadd.f32 %v281, 3.0
  %v298 = vadd.f32 %v282, 3.0
  %v299 = vadd.f32 %v283, 3.0
  %v300 = vmax.f32 %v284, 0.0
  %v301 = vmax.f32 %v285, 0.0
  %v302 = vmax.f32 %v286, 0.0
  %v303 = vmax.f32 %v287, 0.0
  %v304 = vmax.f32 %v288, 0.0
  %v305 = vmax.f32 %v289, 0.0
  %v306 = vmax.f32 %v290, 0.0
  %v307 = vmax.f32 %v291, 0.0
  %v308 = vmax.f32 %v292, 0.0
  %v309 = vmax.f32 %v293, 0.0
  %v310 = vmax.f32 %v294, 0.0
  %v311 = vmax.f32 %v295, 0.0
  %v312 = vmax.f32 %v296, 0.0
  %v313 = vmax.f32 %v297, 0.0
  %v314 = vmax.f32 %v298, 0.0
  %v315 = vmax.f32 %v299, 0.0
  %v316 = vmin.f32 %v300, 6.0
  %v317 = vmin.f32 %v301, 6.0
  %v318 = vmin.f32 %v302, 6.0
  %v319 = vmin.f32 %v303, 6.0
  %v320 = vmin.f32 %v304, 6.0
  %v321 = vmin.f32 %v305, 6.0
  %v322 = vmin.f32 %v306, 6.0
  %v323 = vmin.f32 %v307, 6.0
  %v324 = vmin.f32 %v308, 6.0
  %v325 = vmin.f32 %v309, 6.0
  %v326 = vmin.f32 %v310, 6.0
  %v327 = vmin.f32 %v311, 6.0
  %v328 = vmin.f32 %v312, 6.0
  %v329 = vmin.f32 %v313, 6.0
  %v330 = vmin.f32 %v314, 6.0
  %v331 = vmin.f32 %v315, 6.0
  %v332 = vmul.f32 %v268, %v316
  %v333 = vmul.f32 %v269, %v317
  %v334 = vmul.f32 %v270, %v318
  %v335 = vmul.f32 %v271, %v319
  %v336 = vmul.f32 %v272, %v320
  %v337 = vmul.f32 %v273, %v321
  %v338 = vmul.f32 %v274, %v322
  %v339 = vmul.f32 %v275, %v323
  %v340 = vmul.f32 %v276, %v324
  %v341 = vmul.f32 %v277, %v325
  %v342 = vmul.f32 %v278, %v326
  %v343 = vmul.f32 %v279, %v327
  %v344 = vmul.f32 %v280, %v328
  %v345 = vmul.f32 %v281, %v329
  %v346 = vmul.f32 %v282, %v330
  %v347 = vmul.f32 %v283, %v331
  %v348 = vmul.f32 %v332, 0.16666667
  %v349 = vmul.f32 %v333, 0.16666667
  %v350 = vmul.f32 %v334, 0.16666667
  %v351 = vmul.f32 %v335, 0.16666667
  %v352 = vmul.f32 %v336, 0.16666667
  %v353 = vmul.f32 %v337, 0.16666667
  %v354 = vmul.f32 %v338, 0.16666667
  %v355 = vmul.f32 %v339, 0.16666667
  %v356 = vmul.f32 %v340, 0.16666667
  %v357 = vmul.f32 %v341, 0.16666667
  %v358 = vmul.f32 %v342, 0.16666667
  %v359 = vmul.f32 %v343, 0.16666667
  %v360 = vmul.f32 %v344, 0.16666667
  %v361 = vmul.f32 %v345, 0.16666667
  %v362 = vmul.f32 %v346, 0.16666667
  %v363 = vmul.f32 %v347, 0.16666667
  %v364 = vld [vmem:[%s4] sm:$0xff]
  %v365 = vld [vmem:[%s4 + $0x8] sm:$0xff]
  %v366 = vld [vmem:[%s4 + $0x10] sm:$0xff]
  %v367 = vld [vmem:[%s4 + $0x18] sm:$0xff]
  %vm368 = vcmask 261120
  %v370 = vsel %vm368, %v348, 0
  %v373 = vsel %vm368, %v349, 0
  %v376 = vsel %vm368, %v350, 0
  %v379 = vsel %vm368, %v351, 0
  %v382 = vsel %vm368, %v352, 0
  %v385 = vsel %vm368, %v353, 0
  %v388 = vsel %vm368, %v354, 0
  %v391 = vsel %vm368, %v355, 0
  %v394 = vsel %vm368, %v356, 0
  %v397 = vsel %vm368, %v357, 0
  %v400 = vsel %vm368, %v358, 0
  %v403 = vsel %vm368, %v359, 0
  %v406 = vsel %vm368, %v360, 0
  %v409 = vsel %vm368, %v361, 0
  %v412 = vsel %vm368, %v362, 0
  %v415 = vsel %vm368, %v363, 0
  %417 = vmatprep.subr.mxu0 0.0
  %418 = vmatpush1.msra.mxu0 0.0
  %419 = vmatprep.subr.mxu0 0.0
  %420 = vmatpush1.msra.mxu0 0.0
  %421 = vmatprep.subr.mxu0 0.0
  %422 = vmatpush1.msra.mxu0 0.0
  %423 = vmatprep.subr.mxu0 0.0
  %424 = vmatpush1.msra.mxu0 0.0
  %425 = vmatprep.subr.mxu0 0.0
  %426 = vmatpush1.msra.mxu0 0.0
  %427 = vmatprep.subr.mxu0 0.0
  %428 = vmatpush1.msra.mxu0 0.0
  %429 = vmatprep.subr.mxu0 0.0
  %430 = vmatpush1.msra.mxu0 0.0
  %431 = vmatprep.subr.mxu0 0.0
  %432 = vmatpush1.msra.mxu0 0.0
  %433 = vmatprep.subr.mxu0 0.0
  %434 = vmatpush1.msra.mxu0 0.0
  %435 = vmatprep.subr.mxu0 0.0
  %436 = vmatpush1.msra.mxu0 0.0
  %437 = vmatprep.subr.mxu0 0.0
  %438 = vmatpush1.msra.mxu0 0.0
  %439 = vmatprep.subr.mxu0 0.0
  %440 = vmatpush1.msra.mxu0 0.0
  %441 = vmatprep.subr.mxu0 0.0
  %442 = vmatpush1.msra.mxu0 %v367
  %443 = vmatprep.subr.mxu0 0.0
  %444 = vmatpush1.msra.mxu0 %v366
  %445 = vmatprep.subr.mxu0 0.0
  %446 = vmatpush1.msra.mxu0 %v365
  %447 = vmatprep.subr.mxu0 0.0
  %448 = vmatpush1.msra.mxu0 %v364
  %449 = vmatprep.subr.mxu0 0.0
  %450 = vmatpush2.msra.mxu0 0.0
  %451 = vmatprep.subr.mxu0 0.0
  %452 = vmatpush2.msra.mxu0 0.0
  %453 = vmatprep.subr.mxu0 0.0
  %454 = vmatpush2.msra.mxu0 0.0
  %455 = vmatprep.subr.mxu0 0.0
  %456 = vmatpush2.msra.mxu0 0.0
  %457 = vmatprep.subr.mxu0 0.0
  %458 = vmatpush2.msra.mxu0 0.0
  %459 = vmatprep.subr.mxu0 0.0
  %460 = vmatpush2.msra.mxu0 0.0
  %461 = vmatprep.subr.mxu0 0.0
  %462 = vmatpush2.msra.mxu0 0.0
  %463 = vmatprep.subr.mxu0 0.0
  %464 = vmatpush2.msra.mxu0 0.0
  %465 = vmatprep.subr.mxu0 0.0
  %466 = vmatpush2.msra.mxu0 0.0
  %467 = vmatprep.subr.mxu0 0.0
  %468 = vmatpush2.msra.mxu0 0.0
  %469 = vmatprep.subr.mxu0 0.0
  %470 = vmatpush2.msra.mxu0 0.0
  %471 = vmatprep.subr.mxu0 0.0
  %472 = vmatpush2.msra.mxu0 0.0
  %473 = vmatprep.subr.mxu0 0.0
  %474 = vmatpush2.msra.mxu0 0.0
  %475 = vmatprep.subr.mxu0 0.0
  %476 = vmatpush2.msra.mxu0 0.0
  %477 = vmatprep.subr.mxu0 0.0
  %478 = vmatpush2.msra.mxu0 0.0
  %479 = vmatprep.subr.mxu0 0.0
  %480 = vmatpush2.msra.mxu0 0.0
  %481 = vmatprep.mubr.f32.mxu0 0.0
  %482 = vmatmul.mubr.f32.gmra.mxu0 %v370
  %v483 = vpop.f32.mrf.mxu0
  %v484 = vadd.f32 0.0, %v483
  %v485 = vpop.f32.mrf.mxu0
  %486 = vmatprep.mubr.f32.mxu0 0.0
  %487 = vmatmul.mubr.f32.gmra.mxu0 %v373
  %v488 = vpop.f32.mrf.mxu0
  %v489 = vadd.f32 0.0, %v488
  %v490 = vpop.f32.mrf.mxu0
  %491 = vmatprep.mubr.f32.mxu0 0.0
  %492 = vmatmul.mubr.f32.gmra.mxu0 %v376
  %v493 = vpop.f32.mrf.mxu0
  %v494 = vadd.f32 0.0, %v493
  %v495 = vpop.f32.mrf.mxu0
  %496 = vmatprep.mubr.f32.mxu0 0.0
  %497 = vmatmul.mubr.f32.gmra.mxu0 %v379
  %v498 = vpop.f32.mrf.mxu0
  %v499 = vadd.f32 0.0, %v498
  %v500 = vpop.f32.mrf.mxu0
  %501 = vmatprep.mubr.f32.mxu0 0.0
  %502 = vmatmul.mubr.f32.gmra.mxu0 %v382
  %v503 = vpop.f32.mrf.mxu0
  %v504 = vadd.f32 0.0, %v503
  %v505 = vpop.f32.mrf.mxu0
  %506 = vmatprep.mubr.f32.mxu0 0.0
  %507 = vmatmul.mubr.f32.gmra.mxu0 %v385
  %v508 = vpop.f32.mrf.mxu0
  %v509 = vadd.f32 0.0, %v508
  %v510 = vpop.f32.mrf.mxu0
  %511 = vmatprep.mubr.f32.mxu0 0.0
  %512 = vmatmul.mubr.f32.gmra.mxu0 %v388
  %v513 = vpop.f32.mrf.mxu0
  %v514 = vadd.f32 0.0, %v513
  %v515 = vpop.f32.mrf.mxu0
  %516 = vmatprep.mubr.f32.mxu0 0.0
  %517 = vmatmul.mubr.f32.gmra.mxu0 %v391
  %v518 = vpop.f32.mrf.mxu0
  %v519 = vadd.f32 0.0, %v518
  %v520 = vpop.f32.mrf.mxu0
  %521 = vmatprep.mubr.f32.mxu0 0.0
  %522 = vmatmul.mubr.f32.gmra.mxu0 %v394
  %v523 = vpop.f32.mrf.mxu0
  %v524 = vadd.f32 0.0, %v523
  %v525 = vpop.f32.mrf.mxu0
  %526 = vmatprep.mubr.f32.mxu0 0.0
  %527 = vmatmul.mubr.f32.gmra.mxu0 %v397
  %v528 = vpop.f32.mrf.mxu0
  %v529 = vadd.f32 0.0, %v528
  %v530 = vpop.f32.mrf.mxu0
  %531 = vmatprep.mubr.f32.mxu0 0.0
  %532 = vmatmul.mubr.f32.gmra.mxu0 %v400
  %v533 = vpop.f32.mrf.mxu0
  %v534 = vadd.f32 0.0, %v533
  %v535 = vpop.f32.mrf.mxu0
  %536 = vmatprep.mubr.f32.mxu0 0.0
  %537 = vmatmul.mubr.f32.gmra.mxu0 %v403
  %v538 = vpop.f32.mrf.mxu0
  %v539 = vadd.f32 0.0, %v538
  %v540 = vpop.f32.mrf.mxu0
  %541 = vmatprep.mubr.f32.mxu0 0.0
  %542 = vmatmul.mubr.f32.gmra.mxu0 %v406
  %v543 = vpop.f32.mrf.mxu0
  %v544 = vadd.f32 0.0, %v543
  %v545 = vpop.f32.mrf.mxu0
  %546 = vmatprep.mubr.f32.mxu0 0.0
  %547 = vmatmul.mubr.f32.gmra.mxu0 %v409
  %v548 = vpop.f32.mrf.mxu0
  %v549 = vadd.f32 0.0, %v548
  %v550 = vpop.f32.mrf.mxu0
  %551 = vmatprep.mubr.f32.mxu0 0.0
  %552 = vmatmul.mubr.f32.gmra.mxu0 %v412
  %v553 = vpop.f32.mrf.mxu0
  %v554 = vadd.f32 0.0, %v553
  %v555 = vpop.f32.mrf.mxu0
  %556 = vmatprep.mubr.f32.mxu0 0.0
  %557 = vmatmul.mubr.f32.gmra.mxu0 %v415
  %v558 = vpop.f32.mrf.mxu0
  %v559 = vadd.f32 0.0, %v558
  %v560 = vpop.f32.mrf.mxu0
  %561 = vdwg.mxu0
  %v562 = vadd.f32 %v348, %v484
  %v563 = vadd.f32 %v349, %v489
  %v564 = vadd.f32 %v350, %v494
  %v565 = vadd.f32 %v351, %v499
  %v566 = vadd.f32 %v352, %v504
  %v567 = vadd.f32 %v353, %v509
  %v568 = vadd.f32 %v354, %v514
  %v569 = vadd.f32 %v355, %v519
  %v570 = vadd.f32 %v356, %v524
  %v571 = vadd.f32 %v357, %v529
  %v572 = vadd.f32 %v358, %v534
  %v573 = vadd.f32 %v359, %v539
  %v574 = vadd.f32 %v360, %v544
  %v575 = vadd.f32 %v361, %v549
  %v576 = vadd.f32 %v362, %v554
  %v577 = vadd.f32 %v363, %v559
  %v578 = vld [vmem:[%s5] sm:$0x1]
  %v580 = vlaneseq
  %v581 = vshrl.u32 %v580, 7
  %v582 = vsub.s32 0, %v581
  %v583 = vrot.slane %v578, %v582
  %v585 = vadd.f32 %v562, %v583
  %v586 = vadd.f32 %v563, %v583
  %v587 = vadd.f32 %v564, %v583
  %v588 = vadd.f32 %v565, %v583
  %v589 = vadd.f32 %v566, %v583
  %v590 = vadd.f32 %v567, %v583
  %v591 = vadd.f32 %v568, %v583
  %v592 = vadd.f32 %v569, %v583
  %v593 = vadd.f32 %v570, %v583
  %v594 = vadd.f32 %v571, %v583
  %v595 = vadd.f32 %v572, %v583
  %v596 = vadd.f32 %v573, %v583
  %v597 = vadd.f32 %v574, %v583
  %v598 = vadd.f32 %v575, %v583
  %v599 = vadd.f32 %v576, %v583
  %v600 = vadd.f32 %v577, %v583
  %601 = vst.msk [vmem:[%s6] sm:$0xff] %vm368, %v585
  %602 = vst.msk [vmem:[%s6 + $0x8] sm:$0xff] %vm368, %v586
  %603 = vst.msk [vmem:[%s6 + $0x10] sm:$0xff] %vm368, %v587
  %604 = vst.msk [vmem:[%s6 + $0x18] sm:$0xff] %vm368, %v588
  %605 = vst.msk [vmem:[%s6 + $0x20] sm:$0xff] %vm368, %v589
  %606 = vst.msk [vmem:[%s6 + $0x28] sm:$0xff] %vm368, %v590
  %607 = vst.msk [vmem:[%s6 + $0x30] sm:$0xff] %vm368, %v591
  %608 = vst.msk [vmem:[%s6 + $0x38] sm:$0xff] %vm368, %v592
  %609 = vst.msk [vmem:[%s6 + $0x40] sm:$0xff] %vm368, %v593
  %610 = vst.msk [vmem:[%s6 + $0x48] sm:$0xff] %vm368, %v594
  %611 = vst.msk [vmem:[%s6 + $0x50] sm:$0xff] %vm368, %v595
  %612 = vst.msk [vmem:[%s6 + $0x58] sm:$0xff] %vm368, %v596
  %613 = vst.msk [vmem:[%s6 + $0x60] sm:$0xff] %vm368, %v597
  %614 = vst.msk [vmem:[%s6 + $0x68] sm:$0xff] %vm368, %v598
  %615 = vst.msk [vmem:[%s6 + $0x70] sm:$0xff] %vm368, %v599
  %616 = vst.msk [vmem:[%s6 + $0x78] sm:$0xff] %vm368, %v600
  // Predicated region
  $region26: #{tpu_custom_call.1} parent=0 // pred_check
    _
  $region27: #{tpu_custom_call.1} parent=0 // pred_check_branch
    %618 = sbr.rel (0) target = $region29
  $region28: #{tpu_custom_call.1} parent=0 // pred_region
    _
  $region29: #{tpu_custom_call.1} parent=0 // pred_fallthru
    _
  // Predicated region
  $region30: #{tpu_custom_call.1} parent=0 // pred_check
    _
  $region31: #{tpu_custom_call.1} parent=0 // pred_check_branch
    %620 = sbr.rel (0) target = $region33
  $region32: #{tpu_custom_call.1} parent=0 // pred_region
    _
  $region33: #{tpu_custom_call.1} parent=0 // pred_fallthru
    _

</llo_original>
